<compile_context>
chip_gen: v6e
topology: v6e:2x2x1
jax: 0.10.0
libtpu: 0.0.40
codegen_flags: <defaults>
</compile_context>

<pallas_src>
import functools
import math

import jax
import jax.numpy as jnp
from jax import lax
from jax.experimental import pallas as pl
from jax.experimental.pallas import tpu as pltpu


# ---------------------------------------------------------------------------
# Kernel
# ---------------------------------------------------------------------------
def se_block_kernel(x_ref, w1_ref, b1_ref, w2_ref, b2_ref, o_ref, stat_ref, *,
                    inv_hw, hw_total, thw, mask_tail, scale_f32):
    """Two-phase SE block.

    Grid = (batch_blocks, 2, spatial_chunks).
    Phase 0: accumulate the global average pool into stat_ref; on the last
             spatial chunk turn it into the sigmoid gate (fc1->relu->fc2->sigm).
    Phase 1: re-read the same x blocks and write x * gate.
    """
    p = pl.program_id(1)
    h = pl.program_id(2)
    last_h = pl.num_programs(2) - 1

    @pl.when(p == 0)
    def _pool_and_gate():
        x = x_ref[...]                                        # (tb, C, thw)
        if mask_tail:
            pos = h * thw + lax.broadcasted_iota(jnp.int32, x.shape, 2)
            x = jnp.where(pos < hw_total, x, jnp.zeros_like(x))
        part = jnp.sum(x, axis=-1, dtype=jnp.float32)         # (tb, C) f32

        @pl.when(h == 0)
        def _init():
            stat_ref[...] = part

        @pl.when(h != 0)
        def _accum():
            stat_ref[...] = stat_ref[...] + part

        @pl.when(h == last_h)
        def _gate():
            pooled = stat_ref[...] * inv_hw                   # (tb, C) f32
            w1 = w1_ref[...]
            hid = jnp.dot(pooled.astype(w1.dtype), w1,
                          preferred_element_type=jnp.float32) + b1_ref[...]
            hid = jnp.maximum(hid, 0.0)
            w2 = w2_ref[...]
            gate = jnp.dot(hid.astype(w2.dtype), w2,
                           preferred_element_type=jnp.float32) + b2_ref[...]
            stat_ref[...] = jax.nn.sigmoid(gate)              # (tb, C) f32

    @pl.when(p == 1)
    def _scale():
        x = x_ref[...]
        gate = stat_ref[...]                                  # (tb, C) f32
        if scale_f32:
            o_ref[...] = (x.astype(jnp.float32) * gate[:, :, None]).astype(o_ref.dtype)
        else:
            o_ref[...] = x * gate.astype(x.dtype)[:, :, None]


# ---------------------------------------------------------------------------
# Chip / VMEM heuristics
# ---------------------------------------------------------------------------
def _tpu_generation():
    try:
        kind = jax.devices()[0].device_kind.lower()
    except Exception:
        return 0
    for g in (7, 6, 5, 4, 3, 2):
        if str(g) in kind:
            return g
    return 0


def _vmem_capacity_bytes(gen):
    try:
        return int(pltpu.get_tpu_info().vmem_capacity_bytes)
    except Exception:
        pass
    if gen >= 7:
        return 64 << 20
    if gen in (4, 5, 6):
        return 128 << 20
    if gen in (2, 3):
        return 16 << 20
    return 64 << 20   # unknown: conservative


def _const_spec(shape):
    """BlockSpec for a grid-invariant operand (weights/biases): single-buffered."""
    index_map = lambda b, p, h: (0,) * len(shape)
    try:
        return pl.BlockSpec(shape, index_map, pipeline_mode=pl.Buffered(1))
    except Exception:   # older jax without pipeline_mode: default double buffering
        return pl.BlockSpec(shape, index_map)


def _choose_tiling(B, C, HW, itemsize, slab_copies, fixed_bytes, budget_bytes,
                   num_cores):
    """Pick (tb, thw): batch rows per block and spatial chunk length."""
    avail = max(budget_bytes - fixed_bytes, 1 << 20)
    row_bytes = C * HW * itemsize                 # one batch row, full spatial

    tb_max = avail // (slab_copies * row_bytes)
    if tb_max >= 1:
        tb = int(min(B, tb_max))
        # (a) give the pipeline >= 2 steps / feed all cores, but never shrink a
        #     tile below ~4 MiB just to add steps (per-step overhead ~0.35us).
        min_steps = 2 * max(1, num_cores)
        tb_steps = pl.cdiv(B, min_steps)
        if tb_steps < tb and tb_steps * row_bytes >= (4 << 20):
            tb = tb_steps
        elif num_cores > 1 and B >= num_cores:
            tb = min(tb, pl.cdiv(B, num_cores))
        # (b) on multi-TC chips keep the step count a multiple of the core
        #     count so no core idles on the remainder.
        if num_cores > 1 and B >= num_cores:
            for t in range(tb, 0, -1):
                if pl.cdiv(B, t) % num_cores == 0:
                    tb = t
                    break
        return int(tb), HW

    # Even a single batch row does not fit VMEM: chunk the spatial axis
    # (phase 1 then re-reads x -- the unavoidable cost of not fitting).
    if HW <= 128:
        # TODO(synk): also split C when a single (1, C, HW<=128) chunk still
        # exceeds the VMEM budget.
        return 1, HW
    thw_max = avail // (slab_copies * C * itemsize)
    thw = int(min(HW, max(128, (thw_max // 128) * 128)))   # lane rule: x128 or full
    return 1, thw


# ---------------------------------------------------------------------------
# Wrapper
# ---------------------------------------------------------------------------
def se_block(x, w1, b1, w2, b2):
    """Squeeze-and-Excitation forward. x: (B, C, H, W) NCHW.

    Weights follow the `y @ W + b` convention (w1/w2 are the transposes of
    PyTorch's nn.Linear.weight)."""
    B, C, H, W = x.shape
    HW = H * W
    Cr = w1.shape[1]
    itemsize = jnp.dtype(x.dtype).itemsize
    wsize = jnp.dtype(w1.dtype).itemsize

    gen = _tpu_generation()
    num_cores = 2 if gen >= 7 else 1
    vmem_limit = int(_vmem_capacity_bytes(gen) * 3 // 4)

    # f32 multiply for f32 inputs, and for sub-f32 inputs on v5e (no bf16 VALU).
    scale_f32 = (jnp.dtype(x.dtype) == jnp.dtype(jnp.float32)) or gen <= 5
    # in + out, each double buffered (=4 slabs); + 2 slab-equivalents if the
    # f32 scale path materializes an f32 copy of a sub-f32 tile.
    slab_copies = 4 + (2 if (scale_f32 and itemsize < 4) else 0)

    weight_bytes = 2 * C * Cr * wsize + (C + Cr) * 4
    fixed_bytes = weight_bytes + (2 << 20)      # weights + scratch + margin

    tb, thw = _choose_tiling(B, C, HW, itemsize, slab_copies, fixed_bytes,
                             vmem_limit, num_cores)
    nb = pl.cdiv(B, tb)
    nhw = pl.cdiv(HW, thw)

    # Free reshape (no transpose, no HBM traffic): NCHW -> (B, C, HW).
    x3 = x.reshape(B, C, HW)
    b1_2d = b1.reshape(1, Cr).astype(jnp.float32)
    b2_2d = b2.reshape(1, C).astype(jnp.float32)

    kernel = functools.partial(
        se_block_kernel,
        inv_hw=1.0 / HW, hw_total=HW, thw=thw,
        mask_tail=(HW % thw != 0), scale_f32=scale_f32)

    x_bytes = B * C * HW * itemsize
    cost = pl.CostEstimate(
        flops=2 * B * HW * C + 4 * B * C * Cr,
        transcendentals=B * C,
        bytes_accessed=(2 if nhw > 1 else 1) * x_bytes + x_bytes + weight_bytes,
    )

    out3 = pl.pallas_call(
        kernel,
        out_shape=jax.ShapeDtypeStruct((B, C, HW), x.dtype),
        grid_spec=pltpu.PrefetchScalarGridSpec(
            num_scalar_prefetch=0,
            grid=(nb, 2, nhw),
            in_specs=[
                pl.BlockSpec((tb, C, thw), lambda b, p, h: (b, 0, h)),
                _const_spec((C, Cr)),
                _const_spec((1, Cr)),
                _const_spec((Cr, C)),
                _const_spec((1, C)),
            ],
            # Phase 0 pins the output index to the chunk that phase 1 writes
            # first, so no un-written block is ever flushed back to HBM.
            out_specs=pl.BlockSpec((tb, C, thw), lambda b, p, h: (b, 0, h * p)),
            scratch_shapes=[pltpu.VMEM((tb, C), jnp.float32)],
        ),
        compiler_params=pltpu.CompilerParams(
            dimension_semantics=("parallel", "arbitrary", "arbitrary"),
            vmem_limit_bytes=vmem_limit,
        ),
        cost_estimate=cost,
    )(x3, w1, b1_2d, w2, b2_2d)

    return out3.reshape(B, C, H, W)


def se_block_ref(x, w1, b1, w2, b2):
    """Pure-JAX reference mirroring the PyTorch forward."""
    B, C, H, W = x.shape
    y = jnp.mean(x, axis=(2, 3))             # AvgPool2d over full spatial extent
    y = y @ w1 + b1
    y = jnp.maximum(y, 0.0)
    y = y @ w2 + b2
    y = jax.nn.sigmoid(y)
    return x * y.reshape(B, C, 1, 1)


if __name__ == "__main__":
    # SE_block(in_channels=4, red_ratio=2) -> fc1: 4 -> 2, fc2: 2 -> 4
    B, C, H, W = 2, 4, 16, 16
    red_ratio = 2
    Cr = math.floor(C / red_ratio)

    key = jax.random.PRNGKey(0)
    kx, k1, k2, k3, k4 = jax.random.split(key, 5)

    x = jax.random.normal(kx, (B, C, H, W), dtype=jnp.float32)

    # Deterministic init mimicking nn.Linear (uniform +/- 1/sqrt(fan_in)).
    bound1 = 1.0 / math.sqrt(C)
    w1 = jax.random.uniform(k1, (C, Cr), jnp.float32, -bound1, bound1)
    b1 = jax.random.uniform(k2, (Cr,), jnp.float32, -bound1, bound1)
    bound2 = 1.0 / math.sqrt(Cr)
    w2 = jax.random.uniform(k3, (Cr, C), jnp.float32, -bound2, bound2)
    b2 = jax.random.uniform(k4, (C,), jnp.float32, -bound2, bound2)

    out = jax.block_until_ready(se_block(x, w1, b1, w2, b2))

    ref = se_block_ref(x, w1, b1, w2, b2)
    assert out.shape == (B, C, H, W)
    assert jnp.allclose(out, ref, atol=1e-5, rtol=1e-5), float(
        jnp.max(jnp.abs(out - ref)))

    print("KERNEL_OK")
</pallas_src>

<mosaic_0001>
module attributes {stable_mosaic.version = 11 : i64} {
  func.func @se_block_kernel(%arg0: i32, %arg1: i32, %arg2: i32, %arg3: memref<2x4x256xf32, #tpu.memory_space<vmem>>, %arg4: memref<4x2xf32, #tpu.memory_space<vmem>>, %arg5: memref<1x2xf32, #tpu.memory_space<vmem>>, %arg6: memref<2x4xf32, #tpu.memory_space<vmem>>, %arg7: memref<1x4xf32, #tpu.memory_space<vmem>>, %arg8: memref<2x4x256xf32, #tpu.memory_space<vmem>>, %arg9: memref<2x4xf32, #tpu.memory_space<vmem>>) attributes {dimension_semantics = [#tpu.dimension_semantics<parallel>, #tpu.dimension_semantics<arbitrary>, #tpu.dimension_semantics<arbitrary>], iteration_bounds = array<i64: 1, 2, 1>, scalar_prefetch = 0 : i64, scratch_operands = 1 : i64, tpu.core_type = #tpu.core_type<tc>, window_params = [{transform_indices = @transform_0, window_bounds = array<i64: 2, 4, 256>}, {pipeline_mode = #tpu.pipeline_mode<synchronous>, transform_indices = @transform_1, window_bounds = array<i64: 4, 2>}, {pipeline_mode = #tpu.pipeline_mode<synchronous>, transform_indices = @transform_2, window_bounds = array<i64: 1, 2>}, {pipeline_mode = #tpu.pipeline_mode<synchronous>, transform_indices = @transform_3, window_bounds = array<i64: 2, 4>}, {pipeline_mode = #tpu.pipeline_mode<synchronous>, transform_indices = @transform_4, window_bounds = array<i64: 1, 4>}, {transform_indices = @transform_5, window_bounds = array<i64: 2, 4, 256>}]} {
    %c0_i32 = arith.constant 0 : i32
    %0 = arith.cmpi eq, %arg1, %c0_i32 : i32
    %1 = arith.extui %0 : i1 to i32
    %c0_i32_0 = arith.constant 0 : i32
    %2 = arith.cmpi ne, %1, %c0_i32_0 : i32
    scf.if %2 {
      %c0 = arith.constant 0 : index
      %c0_2 = arith.constant 0 : index
      %c0_3 = arith.constant 0 : index
      %6 = vector.load %arg3[%c0, %c0_2, %c0_3] : memref<2x4x256xf32, #tpu.memory_space<vmem>>, vector<2x4x256xf32>
      %cst = arith.constant dense<0.000000e+00> : vector<2x4xf32>
      %7 = vector.multi_reduction <add>, %6, %cst [2] : vector<2x4x256xf32> to vector<2x4xf32>
      %c0_i32_4 = arith.constant 0 : i32
      %8 = arith.cmpi eq, %arg2, %c0_i32_4 : i32
      %9 = arith.extui %8 : i1 to i32
      %c0_i32_5 = arith.constant 0 : i32
      %10 = arith.cmpi ne, %9, %c0_i32_5 : i32
      scf.if %10 {
        %c0_10 = arith.constant 0 : index
        %c0_11 = arith.constant 0 : index
        %17 = vector.load %arg9[%c0_10, %c0_11] : memref<2x4xf32, #tpu.memory_space<vmem>>, vector<2x4xf32>
        tpu.vector_store %arg9[%c0_10, %c0_11], %7 {strides = array<i32>} : memref<2x4xf32, #tpu.memory_space<vmem>>, vector<2x4xf32>,
      } else {
      }
      %c0_i32_6 = arith.constant 0 : i32
      %11 = arith.cmpi ne, %arg2, %c0_i32_6 : i32
      %12 = arith.extui %11 : i1 to i32
      %c0_i32_7 = arith.constant 0 : i32
      %13 = arith.cmpi ne, %12, %c0_i32_7 : i32
      scf.if %13 {
        %c0_10 = arith.constant 0 : index
        %c0_11 = arith.constant 0 : index
        %17 = vector.load %arg9[%c0_10, %c0_11] : memref<2x4xf32, #tpu.memory_space<vmem>>, vector<2x4xf32>
        %18 = arith.addf %17, %7 : vector<2x4xf32>
        %c0_12 = arith.constant 0 : index
        %c0_13 = arith.constant 0 : index
        %19 = vector.load %arg9[%c0_12, %c0_13] : memref<2x4xf32, #tpu.memory_space<vmem>>, vector<2x4xf32>
        tpu.vector_store %arg9[%c0_12, %c0_13], %18 {strides = array<i32>} : memref<2x4xf32, #tpu.memory_space<vmem>>, vector<2x4xf32>,
      } else {
      }
      %c0_i32_8 = arith.constant 0 : i32
      %14 = arith.cmpi eq, %arg2, %c0_i32_8 : i32
      %15 = arith.extui %14 : i1 to i32
      %c0_i32_9 = arith.constant 0 : i32
      %16 = arith.cmpi ne, %15, %c0_i32_9 : i32
      scf.if %16 {
        %c0_10 = arith.constant 0 : index
        %c0_11 = arith.constant 0 : index
        %17 = vector.load %arg9[%c0_10, %c0_11] : memref<2x4xf32, #tpu.memory_space<vmem>>, vector<2x4xf32>
        %cst_12 = arith.constant 3.906250e-03 : f32
        %18 = vector.broadcast %cst_12 : f32 to vector<2x4xf32>
        %19 = arith.mulf %17, %18 : vector<2x4xf32>
        %c0_13 = arith.constant 0 : index
        %c0_14 = arith.constant 0 : index
        %20 = vector.load %arg4[%c0_13, %c0_14] : memref<4x2xf32, #tpu.memory_space<vmem>>, vector<4x2xf32>
        %cst_15 = arith.constant dense<0.000000e+00> : vector<2x2xf32>
        %21 = tpu.matmul %19, %20, %cst_15 {dimension_numbers = #tpu.dot_dimension_numbers<[1], [0], [0], [1], [0, 0, 1, 1], [], []>} : vector<2x4xf32>, vector<4x2xf32>, vector<2x2xf32> -> vector<2x2xf32>
        %c0_16 = arith.constant 0 : index
        %c0_17 = arith.constant 0 : index
        %22 = vector.load %arg5[%c0_16, %c0_17] : memref<1x2xf32, #tpu.memory_space<vmem>>, vector<1x2xf32>
        %23 = vector.broadcast %22 : vector<1x2xf32> to vector<2x2xf32>
        %24 = arith.addf %21, %23 : vector<2x2xf32>
        %cst_18 = arith.constant 0.000000e+00 : f32
        %25 = vector.broadcast %cst_18 : f32 to vector<2x2xf32>
        %26 = arith.maximumf %24, %25 : vector<2x2xf32>
        %c0_19 = arith.constant 0 : index
        %c0_20 = arith.constant 0 : index
        %27 = vector.load %arg6[%c0_19, %c0_20] : memref<2x4xf32, #tpu.memory_space<vmem>>, vector<2x4xf32>
        %cst_21 = arith.constant dense<0.000000e+00> : vector<2x4xf32>
        %28 = tpu.matmul %26, %27, %cst_21 {dimension_numbers = #tpu.dot_dimension_numbers<[1], [0], [0], [1], [0, 0, 1, 1], [], []>} : vector<2x2xf32>, vector<2x4xf32>, vector<2x4xf32> -> vector<2x4xf32>
        %c0_22 = arith.constant 0 : index
        %c0_23 = arith.constant 0 : index
        %29 = vector.load %arg7[%c0_22, %c0_23] : memref<1x4xf32, #tpu.memory_space<vmem>>, vector<1x4xf32>
        %30 = vector.broadcast %29 : vector<1x4xf32> to vector<2x4xf32>
        %31 = arith.addf %28, %30 : vector<2x4xf32>
        %32 = arith.negf %31 : vector<2x4xf32>
        %33 = math.exp %32 : vector<2x4xf32>
        %cst_24 = arith.constant 1.000000e+00 : f32
        %34 = vector.broadcast %cst_24 : f32 to vector<2x4xf32>
        %35 = arith.addf %34, %33 : vector<2x4xf32>
        %36 = arith.divf %34, %35 : vector<2x4xf32>
        %c0_25 = arith.constant 0 : index
        %c0_26 = arith.constant 0 : index
        %37 = vector.load %arg9[%c0_25, %c0_26] : memref<2x4xf32, #tpu.memory_space<vmem>>, vector<2x4xf32>
        tpu.vector_store %arg9[%c0_25, %c0_26], %36 {strides = array<i32>} : memref<2x4xf32, #tpu.memory_space<vmem>>, vector<2x4xf32>,
      } else {
      }
    } else {
    }
    %c1_i32 = arith.constant 1 : i32
    %3 = arith.cmpi eq, %arg1, %c1_i32 : i32
    %4 = arith.extui %3 : i1 to i32
    %c0_i32_1 = arith.constant 0 : i32
    %5 = arith.cmpi ne, %4, %c0_i32_1 : i32
    scf.if %5 {
      %c0 = arith.constant 0 : index
      %c0_2 = arith.constant 0 : index
      %c0_3 = arith.constant 0 : index
      %6 = vector.load %arg3[%c0, %c0_2, %c0_3] : memref<2x4x256xf32, #tpu.memory_space<vmem>>, vector<2x4x256xf32>
      %c0_4 = arith.constant 0 : index
      %c0_5 = arith.constant 0 : index
      %7 = vector.load %arg9[%c0_4, %c0_5] : memref<2x4xf32, #tpu.memory_space<vmem>>, vector<2x4xf32>
      %8 = vector.shape_cast %7 : vector<2x4xf32> to vector<2x4x1xf32>
      %9 = vector.broadcast %8 : vector<2x4x1xf32> to vector<2x4x256xf32>
      %10 = arith.mulf %6, %9 : vector<2x4x256xf32>
      %c0_6 = arith.constant 0 : index
      %c0_7 = arith.constant 0 : index
      %c0_8 = arith.constant 0 : index
      %11 = vector.load %arg8[%c0_6, %c0_7, %c0_8] : memref<2x4x256xf32, #tpu.memory_space<vmem>>, vector<2x4x256xf32>
      tpu.vector_store %arg8[%c0_6, %c0_7, %c0_8], %10 {strides = array<i32>} : memref<2x4x256xf32, #tpu.memory_space<vmem>>, vector<2x4x256xf32>,
    } else {
    }
    return
  }
  func.func @transform_0(%arg0: i32, %arg1: i32, %arg2: i32) -> (i32, i32, i32) {
    %c0_i32 = arith.constant 0 : i32
    %c0_i32_0 = arith.constant 0 : i32
    return %arg0, %c0_i32, %arg2 : i32, i32, i32
  }
  func.func @transform_1(%arg0: i32, %arg1: i32, %arg2: i32) -> (i32, i32) {
    %c0_i32 = arith.constant 0 : i32
    %c0_i32_0 = arith.constant 0 : i32
    %c0_i32_1 = arith.constant 0 : i32
    return %c0_i32, %c0_i32_0 : i32, i32
  }
  func.func @transform_2(%arg0: i32, %arg1: i32, %arg2: i32) -> (i32, i32) {
    %c0_i32 = arith.constant 0 : i32
    %c0_i32_0 = arith.constant 0 : i32
    %c0_i32_1 = arith.constant 0 : i32
    return %c0_i32, %c0_i32_0 : i32, i32
  }
  func.func @transform_3(%arg0: i32, %arg1: i32, %arg2: i32) -> (i32, i32) {
    %c0_i32 = arith.constant 0 : i32
    %c0_i32_0 = arith.constant 0 : i32
    %c0_i32_1 = arith.constant 0 : i32
    return %c0_i32, %c0_i32_0 : i32, i32
  }
  func.func @transform_4(%arg0: i32, %arg1: i32, %arg2: i32) -> (i32, i32) {
    %c0_i32 = arith.constant 0 : i32
    %c0_i32_0 = arith.constant 0 : i32
    %c0_i32_1 = arith.constant 0 : i32
    return %c0_i32, %c0_i32_0 : i32, i32
  }
  func.func @transform_5(%arg0: i32, %arg1: i32, %arg2: i32) -> (i32, i32, i32) {
    %0 = arith.muli %arg2, %arg1 : i32
    %c0_i32 = arith.constant 0 : i32
    %c0_i32_0 = arith.constant 0 : i32
    return %arg0, %c0_i32, %0 : i32, i32, i32
  }
}

</mosaic_0001>

<llo_original>
// kernel: tpu_custom_call.1
$region0: #{tpu_custom_call.1}
  #allocation0 [shape = 'u32[]', space=smem, size = 0x4, offset = 0x4, fixed_abs, tag = 'smem constant byte address 0x4 - core index']
  #allocation1 [shape = 'u32[144,128]{1,0:T(1,128)}', space=vmem, size = 0x12000, scoped, tag = 'internal scratch']
  #allocation2 [shape = 'f32[2,4]{1,0:T(2,128)}', space=vmem, size = 0x400, scoped, tag = 'scratch operand']
  %s0 = inlined_call_operand.hbm [shape: f32[2,4,256], index: 0, kind: input, shape index: {}]
  %s1 = inlined_call_operand.vmem [shape: f32[4,2], index: 1, kind: input, shape index: {}]
  %s2 = inlined_call_operand.vmem [shape: f32[1,2], index: 2, kind: input, shape index: {}]
  %s3 = inlined_call_operand.vmem [shape: f32[2,4], index: 3, kind: input, shape index: {}]
  %s4 = inlined_call_operand.vmem [shape: f32[1,4], index: 4, kind: input, shape index: {}]
  %s5 = inlined_call_operand.hbm [shape: f32[2,4,256], index: 5, kind: output, shape index: {}]
  %s6 = sld [smem:[#allocation0]]
  $region77: #{tpu_custom_call.1} parent=0
    _
  %s8 = ssub.s32 1, %s6
  %s9 = scalar_select 0, %s8, %s6
  $region1: #{tpu_custom_call.1} parent=0
    #allocation3 [shape = 'u8[8192]{0}', space=vmem, size = 0x2000, scoped, tag = 'input window, operand 0, single buffered']
    #allocation4 [shape = 's32[2]{0}', space=sflag, size = 0x8, scoped, tag = 'scoped memory for tpu_custom_call.1']
    #allocation5 [shape = 's32[2]{0}', space=sflag, size = 0x8, scoped, tag = 'scoped memory for tpu_custom_call.1']
    #allocation6 [shape = 'u8[16384]{0}', space=vmem, size = 0x4000, scoped, tag = 'output window, operand 0']
    %10 = vsyncpa [#allocation4], 0
    %11 = vsyncpa [#allocation5], 0
    %s12 = scalar_lea.sflag [#allocation5], 1
    %13 = vsyncpa %s12, 0
    loop: start=0, step=1, limit=4
    $region2: #{tpu_custom_call.1} parent=1 // loop_pre_header
      _
    $region3: #{tpu_custom_call.1} parent=1 // loop_header
      %s15 = sphi 0, %s19
      %p16 = scmp.ge.s32.totalorder %s15, 4
      %s22 = sphi 0, %s41
      %s23 = sphi 0, %s37
      %s24 = sphi 0, %s33
      %s25 = sphi 0, %s22
      %s26 = sphi 0, %s23
      %s27 = sphi 0, %s24
      %s28 = sphi 0, %s25
      %s29 = sphi 0, %s26
      %s30 = sphi 0, %s27
      %s46 = sphi 0, %s48
      %s49 = sphi 0, %s46
      %s50 = sphi 0, %s49
      %s66 = sphi 0, %s50
      %s70 = sphi 0, %s70
      %s72 = sphi 0, %s70
      %s73 = sphi 0, %s72
      %s87 = sphi 0, %s73
      %s91 = sphi 0, %s91
      %s93 = sphi 0, %s91
      %s94 = sphi 0, %s93
      %s108 = sphi 0, %s94
      %s112 = sphi 0, %s112
      %s114 = sphi 0, %s112
      %s115 = sphi 0, %s114
      %s129 = sphi 0, %s115
      %s133 = sphi 0, %s133
      %s135 = sphi 0, %s133
      %s136 = sphi 0, %s135
      %s150 = sphi 0, %s136
      %s160 = sphi 0, %s162
      %s163 = sphi 0, %s160
      %s164 = sphi 0, %s163
      %s180 = sphi 0, %s164
    $region4: #{tpu_custom_call.1} parent=1 // loop_header_branch
      %18 = sbr.rel (%p16) target = $region8
    $region5: #{tpu_custom_call.1} parent=1 // loop_body
      %s20 = ssub.s32 %s15, 1
      %s21 = ssub.s32 %s15, 2
      %s31 = sadd.s32 1, %s24
      %p32 = scmp.ge.s32.totalorder %s31, 1
      %s33 = scalar_select %p32, 0, %s31
      %s34 = sadd.s32 1, %s23
      %s35 = scalar_select %p32, %s34, %s23
      %p36 = scmp.ge.s32.totalorder %s35, 2
      %s37 = scalar_select %p36, 0, %s35
      %s38 = sadd.s32 1, %s22
      %s39 = scalar_select %p36, %s38, %s22
      %p40 = scmp.ge.s32.totalorder %s39, 1
      %s41 = scalar_select %p40, 0, %s39
      %s42 = ssub.s32 %s22, %s41
      %s43 = ssub.s32 %s24, %s33
      %s44 = sor.u32 %s42, %s43
      %p45 = scmp.eq.s32.totalorder %s44, 0
      %s47 = sadd.s32 %s46, 1
      %s48 = scalar_select %p45, %s46, %s47
      %p51 = pneg %p45
      %p52 = scmp.eq.s32.totalorder %s15, 1
      %p53 = por %p51, %p52
      %p54 = scmp.ne.s32.totalorder %s46, %s49
      %p55 = scmp.eq.s32.totalorder %s15, 0
      %p56 = por %p54, %p55
      %p57 = scmp.ne.s32.totalorder %s46, %s49
      %p58 = scmp.eq.s32.totalorder %s20, 1
      %p59 = por %p57, %p58
      %p60 = scmp.ne.s32.totalorder %s49, %s50
      %p61 = scmp.eq.s32.totalorder %s20, 0
      %p62 = por %p60, %p61
      %p63 = scmp.ne.s32.totalorder %s49, %s50
      %p64 = scmp.eq.s32.totalorder %s21, 1
      %p65 = por %p63, %p64
      %p67 = scmp.ne.s32.totalorder %s50, %s66
      %p68 = scmp.eq.s32.totalorder %s21, 0
      %p69 = por %p67, %p68
      %s71 = sadd.s32 %s70, 1
      %p74 = scmp.eq.s32.totalorder %s15, 1
      %p75 = scmp.ne.s32.totalorder %s70, %s72
      %p76 = scmp.eq.s32.totalorder %s15, 0
      %p77 = por %p75, %p76
      %p78 = scmp.ne.s32.totalorder %s70, %s72
      %p79 = scmp.eq.s32.totalorder %s20, 1
      %p80 = por %p78, %p79
      %p81 = scmp.ne.s32.totalorder %s72, %s73
      %p82 = scmp.eq.s32.totalorder %s20, 0
      %p83 = por %p81, %p82
      %p84 = scmp.ne.s32.totalorder %s72, %s73
      %p85 = scmp.eq.s32.totalorder %s21, 1
      %p86 = por %p84, %p85
      %p88 = scmp.ne.s32.totalorder %s73, %s87
      %p89 = scmp.eq.s32.totalorder %s21, 0
      %p90 = por %p88, %p89
      %s92 = sadd.s32 %s91, 1
      %p95 = scmp.eq.s32.totalorder %s15, 1
      %p96 = scmp.ne.s32.totalorder %s91, %s93
      %p97 = scmp.eq.s32.totalorder %s15, 0
      %p98 = por %p96, %p97
      %p99 = scmp.ne.s32.totalorder %s91, %s93
      %p100 = scmp.eq.s32.totalorder %s20, 1
      %p101 = por %p99, %p100
      %p102 = scmp.ne.s32.totalorder %s93, %s94
      %p103 = scmp.eq.s32.totalorder %s20, 0
      %p104 = por %p102, %p103
      %p105 = scmp.ne.s32.totalorder %s93, %s94
      %p106 = scmp.eq.s32.totalorder %s21, 1
      %p107 = por %p105, %p106
      %p109 = scmp.ne.s32.totalorder %s94, %s108
      %p110 = scmp.eq.s32.totalorder %s21, 0
      %p111 = por %p109, %p110
      %s113 = sadd.s32 %s112, 1
      %p116 = scmp.eq.s32.totalorder %s15, 1
      %p117 = scmp.ne.s32.totalorder %s112, %s114
      %p118 = scmp.eq.s32.totalorder %s15, 0
      %p119 = por %p117, %p118
      %p120 = scmp.ne.s32.totalorder %s112, %s114
      %p121 = scmp.eq.s32.totalorder %s20, 1
      %p122 = por %p120, %p121
      %p123 = scmp.ne.s32.totalorder %s114, %s115
      %p124 = scmp.eq.s32.totalorder %s20, 0
      %p125 = por %p123, %p124
      %p126 = scmp.ne.s32.totalorder %s114, %s115
      %p127 = scmp.eq.s32.totalorder %s21, 1
      %p128 = por %p126, %p127
      %p130 = scmp.ne.s32.totalorder %s115, %s129
      %p131 = scmp.eq.s32.totalorder %s21, 0
      %p132 = por %p130, %p131
      %s134 = sadd.s32 %s133, 1
      %p137 = scmp.eq.s32.totalorder %s15, 1
      %p138 = scmp.ne.s32.totalorder %s133, %s135
      %p139 = scmp.eq.s32.totalorder %s15, 0
      %p140 = por %p138, %p139
      %p141 = scmp.ne.s32.totalorder %s133, %s135
      %p142 = scmp.eq.s32.totalorder %s20, 1
      %p143 = por %p141, %p142
      %p144 = scmp.ne.s32.totalorder %s135, %s136
      %p145 = scmp.eq.s32.totalorder %s20, 0
      %p146 = por %p144, %p145
      %p147 = scmp.ne.s32.totalorder %s135, %s136
      %p148 = scmp.eq.s32.totalorder %s21, 1
      %p149 = por %p147, %p148
      %p151 = scmp.ne.s32.totalorder %s136, %s150
      %p152 = scmp.eq.s32.totalorder %s21, 0
      %p153 = por %p151, %p152
      %s154 = smul.u32 %s24, %s23
      %s155 = smul.u32 %s33, %s37
      %s156 = ssub.s32 %s22, %s41
      %s157 = ssub.s32 %s154, %s155
      %s158 = sor.u32 %s156, %s157
      %p159 = scmp.eq.s32.totalorder %s158, 0
      %s161 = sadd.s32 %s160, 1
      %s162 = scalar_select %p159, %s160, %s161
      %p165 = pneg %p159
      %p166 = scmp.eq.s32.totalorder %s15, 1
      %p167 = por %p165, %p166
      %p168 = scmp.ne.s32.totalorder %s160, %s163
      %p169 = scmp.eq.s32.totalorder %s15, 0
      %p170 = por %p168, %p169
      %p171 = scmp.ne.s32.totalorder %s160, %s163
      %p172 = scmp.eq.s32.totalorder %s20, 1
      %p173 = por %p171, %p172
      %p174 = scmp.ne.s32.totalorder %s163, %s164
      %p175 = scmp.eq.s32.totalorder %s20, 0
      %p176 = por %p174, %p175
      %p177 = scmp.ne.s32.totalorder %s163, %s164
      %p178 = scmp.eq.s32.totalorder %s21, 1
      %p179 = por %p177, %p178
      %p181 = scmp.ne.s32.totalorder %s164, %s180
      %p182 = scmp.eq.s32.totalorder %s21, 0
      %p183 = por %p181, %p182
      %p184 = scmp.le.s32.totalorder 1, %s15
      %p185 = scmp.lt.s32.totalorder %s15, 3
      %p186 = pnand %p184, %p185
      %p187 = pneg %p186
      // Predicated region
      $region9: #{tpu_custom_call.1} parent=5 // pred_check
        _
      $region10: #{tpu_custom_call.1} parent=5 // pred_check_branch
        %189 = sbr.rel (%p186) target = $region12
      $region11: #{tpu_custom_call.1} parent=5 // pred_region
        %s190 = ssub.s32 %s15, 1
        // Predicated region
        $region13: #{tpu_custom_call.1} parent=11 // pred_check
          %p191 = pneg %p62
        $region14: #{tpu_custom_call.1} parent=11 // pred_check_branch
          %193 = sbr.rel (%p191) target = $region16
        $region15: #{tpu_custom_call.1} parent=11 // pred_region
          %s194 = smul.u32 2, %s25
          %s195 = smul.u32 2, %s27
          %s197 = ssub.s32 256, 256
          %198 = vsyncadd [#allocation4], %s197
          %s199 = smul.addr %s194, 2
          %s200 = sadd.s32 %s195, %s199
          %s201 = smul.addr %s200, 64
          %s202 = scalar_lea.hbm %s0, %s201
          %s203 = sshll.u32 [#allocation3], 4
          %s204 = int_to_ptr.vmem [resolvable:$true] %s203
          %209 = dma.hbm_to_vmem [thread:$0]  %s202, 256, %s204, [#allocation4], 128, 128, 8
        $region16: #{tpu_custom_call.1} parent=11 // pred_fallthru
          _
        // Predicated region
        $region17: #{tpu_custom_call.1} parent=11 // pred_check
          %p210 = pneg %p83
        $region18: #{tpu_custom_call.1} parent=11 // pred_check_branch
          %212 = sbr.rel (%p210) target = $region20
        $region19: #{tpu_custom_call.1} parent=11 // pred_region
          _
        $region20: #{tpu_custom_call.1} parent=11 // pred_fallthru
          _
        // Predicated region
        $region21: #{tpu_custom_call.1} parent=11 // pred_check
          %p213 = pneg %p104
        $region22: #{tpu_custom_call.1} parent=11 // pred_check_branch
          %215 = sbr.rel (%p213) target = $region24
        $region23: #{tpu_custom_call.1} parent=11 // pred_region
          _
        $region24: #{tpu_custom_call.1} parent=11 // pred_fallthru
          _
        // Predicated region
        $region25: #{tpu_custom_call.1} parent=11 // pred_check
          %p216 = pneg %p125
        $region26: #{tpu_custom_call.1} parent=11 // pred_check_branch
          %218 = sbr.rel (%p216) target = $region28
        $region27: #{tpu_custom_call.1} parent=11 // pred_region
          _
        $region28: #{tpu_custom_call.1} parent=11 // pred_fallthru
          _
        // Predicated region
        $region29: #{tpu_custom_call.1} parent=11 // pred_check
          %p219 = pneg %p146
        $region30: #{tpu_custom_call.1} parent=11 // pred_check_branch
          %221 = sbr.rel (%p219) target = $region32
        $region31: #{tpu_custom_call.1} parent=11 // pred_region
          _
        $region32: #{tpu_custom_call.1} parent=11 // pred_fallthru
          _
      $region12: #{tpu_custom_call.1} parent=5 // pred_fallthru
        _
      %p222 = scmp.lt.s32.totalorder %s15, 2
      // Predicated region
      $region33: #{tpu_custom_call.1} parent=5 // pred_check
        %p223 = pneg %p222
      $region34: #{tpu_custom_call.1} parent=5 // pred_check_branch
        %225 = sbr.rel (%p223) target = $region36
      $region35: #{tpu_custom_call.1} parent=5 // pred_region
        _
      $region36: #{tpu_custom_call.1} parent=5 // pred_fallthru
        _
      %p226 = scmp.le.s32.totalorder 1, %s15
      %p227 = scmp.lt.s32.totalorder %s15, 3
      %p228 = pnand %p226, %p227
      %p229 = pneg %p228
      // Predicated region
      $region37: #{tpu_custom_call.1} parent=5 // pred_check
        _
      $region38: #{tpu_custom_call.1} parent=5 // pred_check_branch
        %231 = sbr.rel (%p228) target = $region40
      $region39: #{tpu_custom_call.1} parent=5 // pred_region
        %s232 = ssub.s32 %s15, 1
        // Predicated region
        $region41: #{tpu_custom_call.1} parent=39 // pred_check
          %p233 = pneg %p62
        $region42: #{tpu_custom_call.1} parent=39 // pred_check_branch
          %235 = sbr.rel (%p233) target = $region44
        $region43: #{tpu_custom_call.1} parent=39 // pred_region
          %236 = dma.done [#allocation4], 256
        $region44: #{tpu_custom_call.1} parent=39 // pred_fallthru
          _
        %p237 = pneg %p62
        %p238 = pneg %p59
        %p239 = pneg %p83
        %p240 = pneg %p80
        %p241 = pneg %p104
        %p242 = pneg %p101
        %p243 = pneg %p125
        %p244 = pneg %p122
        %p245 = pneg %p146
        %p246 = pneg %p143
        %p247 = pneg %p176
        %p248 = pneg %p173
        %s249 = sand.u32 %s163, 1
        %s250 = scalar_lea.sflag [#allocation5], %s249
        %s251 = sand.u32 %s163, 1
        %s252 = smul.addr %s251, 16
        %s253 = scalar_lea.vmem [#allocation6], %s252
        %s254 = smul.u32 2, %s25
        %s255 = smul.u32 2, %s27
        %s256 = smul.u32 %s27, %s26
        %s257 = smul.u32 2, %s25
        %s258 = smul.u32 2, %s256
        %p259 = scmp.eq.s32.totalorder %s26, 0
        // Predicated region
        $region45: #{tpu_custom_call.1} parent=39 // pred_check
          %p260 = pneg %p259
        $region46: #{tpu_custom_call.1} parent=39 // pred_check_branch
          %262 = sbr.rel (%p260) target = $region48
        $region47: #{tpu_custom_call.1} parent=39 // pred_region
          %v263 = vld [vmem:[#allocation3] sm:$0xff]
          %v264 = vld [vmem:[#allocation3 + $0x8] sm:$0xff]
          %v267 = vcombine.high %v263, %v263
          %v268 = vcombine.high %v264, %v264
          %vm271 = vcmask 1043456
          %v272 = vsel %vm271, %v263, 0.0
          %v273 = vsel %vm271, %v267, 0.0
          %v274 = vadd.f32 %v272, %v273
          %275 = vadd.xlane.f32.xlu0 %v274
          %v276 = vpop.xlane.xlu0 %275
          %v277 = vsel %vm271, %v264, 0.0
          %v278 = vsel %vm271, %v268, 0.0
          %v279 = vadd.f32 %v277, %v278
          %280 = vadd.xlane.f32.xlu0 %v279
          %v281 = vpop.xlane.xlu0 %280
          %p282 = scmp.eq.s32.totalorder %s27, 0
          // Predicated region
          $region49: #{tpu_custom_call.1} parent=47 // pred_check
            %p283 = pneg %p282
          $region50: #{tpu_custom_call.1} parent=47 // pred_check_branch
            %285 = sbr.rel (%p283) target = $region52
          $region51: #{tpu_custom_call.1} parent=47 // pred_region
            %v288 = vlaneseq
            %v289 = vand.u32 %v288, 127
            %v290 = vlaneseq
            %v291 = vshrl.u32 %v290, 7
            %v292 = vsub.s32 %v289, %v291
            %v293 = vrot.slane %v276, %v292
            %v294 = vlaneseq
            %v295 = vshrl.u32 %v294, 7
            %v296 = vsub.s32 %v289, %v295
            %v297 = vrot.slane %v281, %v296
            %vm298 = vcmask 1041409
            %v299 = vsel %vm298, %v297, %v293
            %vm301 = vcmask 25600
            %302 = vst.msk [vmem:[#allocation2] sm:$0x3] %vm301, %v299
          $region52: #{tpu_custom_call.1} parent=47 // pred_fallthru
            _
          %p303 = scmp.ne.s32.totalorder %s27, 0
          // Predicated region
          $region53: #{tpu_custom_call.1} parent=47 // pred_check
            %p304 = pneg %p303
          $region54: #{tpu_custom_call.1} parent=47 // pred_check_branch
            %306 = sbr.rel (%p304) target = $region56
          $region55: #{tpu_custom_call.1} parent=47 // pred_region
            %v307 = vld [vmem:[#allocation2] sm:$0x3]
            %v310 = vlaneseq
            %v311 = vand.u32 %v310, 127
            %v312 = vlaneseq
            %v313 = vshrl.u32 %v312, 7
            %v314 = vsub.s32 %v311, %v313
            %v315 = vrot.slane %v276, %v314
            %v316 = vlaneseq
            %v317 = vshrl.u32 %v316, 7
            %v318 = vsub.s32 %v311, %v317
            %v319 = vrot.slane %v281, %v318
            %vm320 = vcmask 1041409
            %v321 = vsel %vm320, %v319, %v315
            %v323 = vadd.f32 %v307, %v321
            %vm324 = vcmask 25600
            %325 = vst.msk [vmem:[#allocation2] sm:$0x3] %vm324, %v323
          $region56: #{tpu_custom_call.1} parent=47 // pred_fallthru
            _
          // Predicated region
          $region57: #{tpu_custom_call.1} parent=47 // pred_check
            %p326 = pneg %p282
          $region58: #{tpu_custom_call.1} parent=47 // pred_check_branch
            %328 = sbr.rel (%p326) target = $region60
          $region59: #{tpu_custom_call.1} parent=47 // pred_region
            %v329 = vld [vmem:[#allocation2] sm:$0x3]
            %v330 = vmul.f32 %v329, 0.00390625
            %v331 = vld [vmem:[%s1] sm:$0xf]
            %v332 = vld [vmem:[%s2] sm:$0x1]
            %v334 = vlaneseq
            %v335 = vshrl.u32 %v334, 7
            %v336 = vsub.s32 0, %v335
            %v337 = vrot.slane %v332, %v336
            %vm339 = vcmask 31744
            %v341 = vsel %vm339, %v330, 0
            %v344 = vsel %vm271, %v331, 0
            %346 = vmatprep.subr.mxu0 0.0
            %347 = vmatpush1.msra.mxu0 0.0
            %348 = vmatprep.subr.mxu0 0.0
            %349 = vmatpush1.msra.mxu0 0.0
            %350 = vmatprep.subr.mxu0 0.0
            %351 = vmatpush1.msra.mxu0 0.0
            %352 = vmatprep.subr.mxu0 0.0
            %353 = vmatpush1.msra.mxu0 0.0
            %354 = vmatprep.subr.mxu0 0.0
            %355 = vmatpush1.msra.mxu0 0.0
            %356 = vmatprep.subr.mxu0 0.0
            %357 = vmatpush1.msra.mxu0 0.0
            %358 = vmatprep.subr.mxu0 0.0
            %359 = vmatpush1.msra.mxu0 0.0
            %360 = vmatprep.subr.mxu0 0.0
            %361 = vmatpush1.msra.mxu0 0.0
            %362 = vmatprep.subr.mxu0 0.0
            %363 = vmatpush1.msra.mxu0 0.0
            %364 = vmatprep.subr.mxu0 0.0
            %365 = vmatpush1.msra.mxu0 0.0
            %366 = vmatprep.subr.mxu0 0.0
            %367 = vmatpush1.msra.mxu0 0.0
            %368 = vmatprep.subr.mxu0 0.0
            %369 = vmatpush1.msra.mxu0 0.0
            %370 = vmatprep.subr.mxu0 0.0
            %371 = vmatpush1.msra.mxu0 0.0
            %372 = vmatprep.subr.mxu0 0.0
            %373 = vmatpush1.msra.mxu0 0.0
            %374 = vmatprep.subr.mxu0 0.0
            %375 = vmatpush1.msra.mxu0 0.0
            %376 = vmatprep.subr.mxu0 0.0
            %377 = vmatpush1.msra.mxu0 %v344
            %378 = vmatprep.subr.mxu0 0.0
            %379 = vmatpush2.msra.mxu0 0.0
            %380 = vmatprep.subr.mxu0 0.0
            %381 = vmatpush2.msra.mxu0 0.0
            %382 = vmatprep.subr.mxu0 0.0
            %383 = vmatpush2.msra.mxu0 0.0
            %384 = vmatprep.subr.mxu0 0.0
            %385 = vmatpush2.msra.mxu0 0.0
            %386 = vmatprep.subr.mxu0 0.0
            %387 = vmatpush2.msra.mxu0 0.0
            %388 = vmatprep.subr.mxu0 0.0
            %389 = vmatpush2.msra.mxu0 0.0
            %390 = vmatprep.subr.mxu0 0.0
            %391 = vmatpush2.msra.mxu0 0.0
            %392 = vmatprep.subr.mxu0 0.0
            %393 = vmatpush2.msra.mxu0 0.0
            %394 = vmatprep.subr.mxu0 0.0
            %395 = vmatpush2.msra.mxu0 0.0
            %396 = vmatprep.subr.mxu0 0.0
            %397 = vmatpush2.msra.mxu0 0.0
            %398 = vmatprep.subr.mxu0 0.0
            %399 = vmatpush2.msra.mxu0 0.0
            %400 = vmatprep.subr.mxu0 0.0
            %401 = vmatpush2.msra.mxu0 0.0
            %402 = vmatprep.subr.mxu0 0.0
            %403 = vmatpush2.msra.mxu0 0.0
            %404 = vmatprep.subr.mxu0 0.0
            %405 = vmatpush2.msra.mxu0 0.0
            %406 = vmatprep.subr.mxu0 0.0
            %407 = vmatpush2.msra.mxu0 0.0
            %408 = vmatprep.subr.mxu0 0.0
            %409 = vmatpush2.msra.mxu0 0.0
            %410 = vmatprep.mubr.f32.mxu0 0.0
            %411 = vmatmul.mubr.f32.gmra.mxu0 %v341
            %v412 = vpop.f32.mrf.mxu0
            %v413 = vadd.f32 %v337, %v412
            %v414 = vpop.f32.mrf.mxu0
            %415 = vdwg.mxu0
            %v416 = vmax.f32 %v413, 0.0
            %v417 = vld [vmem:[%s3] sm:$0x3]
            %v418 = vld [vmem:[%s4] sm:$0x1]
            %v420 = vlaneseq
            %v421 = vshrl.u32 %v420, 7
            %v422 = vsub.s32 0, %v421
            %v423 = vrot.slane %v418, %v422
            %vm425 = vcmask 15360
            %v427 = vsel %vm425, %v416, 0
            %vm429 = vcmask 1041408
            %v431 = vsel %vm429, %v417, 0
            %433 = vmatprep.subr.mxu0 0.0
            %434 = vmatpush1.msra.mxu0 0.0
            %435 = vmatprep.subr.mxu0 0.0
            %436 = vmatpush1.msra.mxu0 0.0
            %437 = vmatprep.subr.mxu0 0.0
            %438 = vmatpush1.msra.mxu0 0.0
            %439 = vmatprep.subr.mxu0 0.0
            %440 = vmatpush1.msra.mxu0 0.0
            %441 = vmatprep.subr.mxu0 0.0
            %442 = vmatpush1.msra.mxu0 0.0
            %443 = vmatprep.subr.mxu0 0.0
            %444 = vmatpush1.msra.mxu0 0.0
            %445 = vmatprep.subr.mxu0 0.0
            %446 = vmatpush1.msra.mxu0 0.0
            %447 = vmatprep.subr.mxu0 0.0
            %448 = vmatpush1.msra.mxu0 0.0
            %449 = vmatprep.subr.mxu0 0.0
            %450 = vmatpush1.msra.mxu0 0.0
            %451 = vmatprep.subr.mxu0 0.0
            %452 = vmatpush1.msra.mxu0 0.0
            %453 = vmatprep.subr.mxu0 0.0
            %454 = vmatpush1.msra.mxu0 0.0
            %455 = vmatprep.subr.mxu0 0.0
            %456 = vmatpush1.msra.mxu0 0.0
            %457 = vmatprep.subr.mxu0 0.0
            %458 = vmatpush1.msra.mxu0 0.0
            %459 = vmatprep.subr.mxu0 0.0
            %460 = vmatpush1.msra.mxu0 0.0
            %461 = vmatprep.subr.mxu0 0.0
            %462 = vmatpush1.msra.mxu0 0.0
            %463 = vmatprep.subr.mxu0 0.0
            %464 = vmatpush1.msra.mxu0 %v431
            %465 = vmatprep.subr.mxu0 0.0
            %466 = vmatpush2.msra.mxu0 0.0
            %467 = vmatprep.subr.mxu0 0.0
            %468 = vmatpush2.msra.mxu0 0.0
            %469 = vmatprep.subr.mxu0 0.0
            %470 = vmatpush2.msra.mxu0 0.0
            %471 = vmatprep.subr.mxu0 0.0
            %472 = vmatpush2.msra.mxu0 0.0
            %473 = vmatprep.subr.mxu0 0.0
            %474 = vmatpush2.msra.mxu0 0.0
            %475 = vmatprep.subr.mxu0 0.0
            %476 = vmatpush2.msra.mxu0 0.0
            %477 = vmatprep.subr.mxu0 0.0
            %478 = vmatpush2.msra.mxu0 0.0
            %479 = vmatprep.subr.mxu0 0.0
            %480 = vmatpush2.msra.mxu0 0.0
            %481 = vmatprep.subr.mxu0 0.0
            %482 = vmatpush2.msra.mxu0 0.0
            %483 = vmatprep.subr.mxu0 0.0
            %484 = vmatpush2.msra.mxu0 0.0
            %485 = vmatprep.subr.mxu0 0.0
            %486 = vmatpush2.msra.mxu0 0.0
            %487 = vmatprep.subr.mxu0 0.0
            %488 = vmatpush2.msra.mxu0 0.0
            %489 = vmatprep.subr.mxu0 0.0
            %490 = vmatpush2.msra.mxu0 0.0
            %491 = vmatprep.subr.mxu0 0.0
            %492 = vmatpush2.msra.mxu0 0.0
            %493 = vmatprep.subr.mxu0 0.0
            %494 = vmatpush2.msra.mxu0 0.0
            %495 = vmatprep.subr.mxu0 0.0
            %496 = vmatpush2.msra.mxu0 0.0
            %497 = vmatprep.mubr.f32.mxu0 0.0
            %498 = vmatmul.mubr.f32.gmra.mxu0 %v427
            %v499 = vpop.f32.mrf.mxu0
            %v500 = vadd.f32 %v423, %v499
            %v501 = vpop.f32.mrf.mxu0
            %502 = vdwg.mxu0
            %v503 = vxor.u32 %v500, 2147483648
            %v504 = vmul.f32 %v503, 1.442695
            %v505 = vpow.pop %v504
            %v506 = vadd.f32 %v505, 1.0
            %v507 = vrcp.pop %v506
            %v508 = vmul.f32 1.0, %v507
            %vm509 = vcmask 25600
            %510 = vst.msk [vmem:[#allocation2] sm:$0x3] %vm509, %v508
          $region60: #{tpu_custom_call.1} parent=47 // pred_fallthru
            _
        $region48: #{tpu_custom_call.1} parent=39 // pred_fallthru
          _
        %p511 = scmp.eq.s32.totalorder %s26, 1
        // Predicated region
        $region61: #{tpu_custom_call.1} parent=39 // pred_check
          %p512 = pneg %p511
        $region62: #{tpu_custom_call.1} parent=39 // pred_check_branch
          %514 = sbr.rel (%p512) target = $region64
        $region63: #{tpu_custom_call.1} parent=39 // pred_region
          %v515 = vld [vmem:[#allocation3] sm:$0xff]
          %v516 = vld [vmem:[#allocation3 + $0x8] sm:$0xff]
          %v517 = vld [vmem:[#allocation2] sm:$0x3]
          %v518 = vlaneseq
          %v519 = vshrl.u32 %v518, 7
          %v520 = vsub.s32 0, %v519
          %v521 = vrot.slane %v517, %v520
          %523 = vbcast.lane.b32.xlu0 %v521, 256
          %v524 = vpop.permute.xlu0 %523
          %v525 = vlaneseq
          %v526 = vshrl.u32 %v525, 7
          %v527 = vsub.s32 1, %v526
          %v528 = vrot.slane %v517, %v527
          %530 = vbcast.lane.b32.xlu0 %v528, 256
          %v531 = vpop.permute.xlu0 %530
          %v535 = vunpack.c.l.s4 839922192
          %v536 = vunpack.c.0.s8 %v535
          %v537 = vlaneseq
          %v538 = vshrl.u32 %v537, 7
          %v539 = vsub.s32 %v536, %v538
          %v540 = vrot.slane %v524, %v539
          %v542 = vunpack.c.l.s4 839922192
          %v543 = vunpack.c.0.s8 %v542
          %v544 = vlaneseq
          %v545 = vshrl.u32 %v544, 7
          %v546 = vsub.s32 %v543, %v545
          %v547 = vrot.slane %v531, %v546
          %v550 = vmul.f32 %v515, %v540
          %v551 = vmul.f32 %v516, %v547
          %552 = vst [vmem:[%s253] sm:$0xff] %v550
          %553 = vst [vmem:[%s253 + $0x8] sm:$0xff] %v551
        $region64: #{tpu_custom_call.1} parent=39 // pred_fallthru
          _
        %s554 = sand.u32 %s163, 1
        %s555 = scalar_lea.sflag [#allocation5], %s554
        %s556 = sand.u32 %s163, 1
        %s557 = smul.addr %s556, 16
        %s558 = scalar_lea.vmem [#allocation6], %s557
        // Predicated region
        $region65: #{tpu_custom_call.1} parent=39 // pred_check
          %p559 = pneg %p173
        $region66: #{tpu_custom_call.1} parent=39 // pred_check_branch
          %561 = sbr.rel (%p559) target = $region68
        $region67: #{tpu_custom_call.1} parent=39 // pred_region
          %s562 = smul.u32 %s27, %s26
          %s563 = smul.u32 2, %s25
          %s564 = smul.u32 2, %s562
          %s566 = ssub.s32 256, 256
          %567 = vsyncadd %s555, %s566
          %s568 = smul.addr %s563, 2
          %s569 = sadd.s32 %s564, %s568
          %s570 = smul.addr %s569, 64
          %s571 = scalar_lea.hbm %s5, %s570
          %s572 = sshll.u32 %s558, 4
          %s573 = int_to_ptr.vmem [resolvable:$true] %s572
          %578 = dma.vmem_to_hbm [thread:$0]  %s573, 256, %s571, %s555, 128, 128, 8
        $region68: #{tpu_custom_call.1} parent=39 // pred_fallthru
          _
      $region40: #{tpu_custom_call.1} parent=5 // pred_fallthru
        _
      %p579 = scmp.le.s32.totalorder 2, %s15
      // Predicated region
      $region69: #{tpu_custom_call.1} parent=5 // pred_check
        %p580 = pneg %p579
      $region70: #{tpu_custom_call.1} parent=5 // pred_check_branch
        %582 = sbr.rel (%p580) target = $region72
      $region71: #{tpu_custom_call.1} parent=5 // pred_region
        %s583 = ssub.s32 %s15, 2
        // Predicated region
        $region73: #{tpu_custom_call.1} parent=71 // pred_check
          %p584 = pneg %p179
        $region74: #{tpu_custom_call.1} parent=71 // pred_check_branch
          %586 = sbr.rel (%p584) target = $region76
        $region75: #{tpu_custom_call.1} parent=71 // pred_region
          %s587 = sand.u32 %s164, 1
          %s588 = scalar_lea.sflag [#allocation5], %s587
          %s589 = sand.u32 %s164, 1
          %s590 = smul.addr %s589, 16
          %s591 = scalar_lea.vmem [#allocation6], %s590
          %592 = dma.done %s588, 256
        $region76: #{tpu_custom_call.1} parent=71 // pred_fallthru
          _
      $region72: #{tpu_custom_call.1} parent=5 // pred_fallthru
        _
    $region6: #{tpu_custom_call.1} parent=1 // loop_footer
      %s19 = sadd.s32 1, %s15
    $region7: #{tpu_custom_call.1} parent=1 // loop_footer_branch
      %14 = sbr.rel target = $region3
    $region8: #{tpu_custom_call.1} parent=1 // loop_exit
      _
    %593 = vsyncpa [#allocation4], 1
    %s594 = scalar_lea.sflag [#allocation4], 1
    %595 = vsyncpa %s594, 1
    %596 = vsyncpa [#allocation5], 1
    %s597 = scalar_lea.sflag [#allocation5], 1
    %598 = vsyncpa %s597, 1

</llo_original>
